<compile_context>
chip_gen: v6e
topology: v6e:2x2x1
jax: 0.10.0
libtpu: 0.0.40
codegen_flags: <defaults>
</compile_context>

<pallas_src>
import functools

import jax
import jax.numpy as jnp
from jax import lax
from jax.experimental import pallas as pl
from jax.experimental.pallas import tpu as pltpu


# --------------------------------------------------------------------------
# Kernels
# --------------------------------------------------------------------------

def _ln_relu_epilogue(h, g_row, bt_row, n_valid, eps):
    """Single-pass LayerNorm + affine + ReLU on a (tm, n_pad) f32 tile.

    Relies on padded lanes of h being exactly 0 (zero-padded weight columns
    and bias), so the sums over n_pad lanes equal the sums over the n_valid
    valid lanes; gamma/beta are zero-padded so padded lanes end up 0.
    """
    inv_n = 1.0 / float(n_valid)
    s1 = jnp.sum(h, axis=-1, keepdims=True)
    s2 = jnp.sum(h * h, axis=-1, keepdims=True)
    mean = s1 * inv_n
    var = jnp.maximum(s2 * inv_n - mean * mean, 0.0)   # guard fp cancellation
    inv_std = lax.rsqrt(var + eps)                     # EUP slot
    # Fuse per-row inv_std with per-column gamma into a single scale.
    normed = (h - mean) * (inv_std * g_row) + bt_row
    return jnp.maximum(normed, 0.0)


def _fused_resident_kernel(x_ref, w_ref, b_ref, g_ref, bt_ref, o_ref,
                           *, n_valid, eps):
    """Weight-resident variant: full K in one shot, no accumulator scratch."""
    x_bf16 = x_ref[...].astype(jnp.bfloat16)           # cast under MXU work
    h = jnp.dot(x_bf16, w_ref[...],
                preferred_element_type=jnp.float32) + b_ref[...]
    o_ref[...] = _ln_relu_epilogue(h, g_ref[...], bt_ref[...],
                                   n_valid, eps).astype(o_ref.dtype)


def _fused_ktile_kernel(x_ref, w_ref, b_ref, g_ref, bt_ref, o_ref, acc_ref,
                        *, n_valid, eps):
    """Fallback: K-tiled reduction with an f32 VMEM accumulator."""
    k = pl.program_id(1)

    @pl.when(k == 0)
    def _():
        acc_ref[...] = jnp.zeros_like(acc_ref)

    acc_ref[...] += jnp.dot(x_ref[...].astype(jnp.bfloat16), w_ref[...],
                            preferred_element_type=jnp.float32)

    @pl.when(k == pl.num_programs(1) - 1)
    def _():
        h = acc_ref[...] + b_ref[...]
        o_ref[...] = _ln_relu_epilogue(h, g_ref[...], bt_ref[...],
                                       n_valid, eps).astype(o_ref.dtype)


# --------------------------------------------------------------------------
# Tiling / VMEM budgeting
# --------------------------------------------------------------------------

def _round_up(v, m):
    return (v + m - 1) // m * m


def _cdiv(a, b):
    return (a + b - 1) // b


def _vmem_budget_bytes():
    """~70% of physical VMEM (64 MiB on v7x, 128 MiB on v5e/v6e)."""
    phys = 64 << 20  # conservative default (v7x per-TensorCore VMEM)
    try:
        info = pltpu.get_tpu_info()
        phys = int(getattr(info, "vmem_capacity_bytes", phys))
    except Exception:
        pass
    return min(int(phys * 0.7), 96 << 20)


def _pick_tm(M, tm_cap):
    """Nearly-full M tiles; >= 2 tiles when M permits (v7x megacore)."""
    m_pad8 = _round_up(max(M, 8), 8)
    tm_cap = max(8, min(tm_cap, m_pad8))
    n_tiles = _cdiv(m_pad8, tm_cap)
    if n_tiles < 2 and m_pad8 >= 16:
        n_tiles = 2
    return _round_up(_cdiv(m_pad8, n_tiles), 8)


def _select_config(M, H_in, H_out, budget):
    k_pad = _round_up(H_in, 128)
    n_pad = _round_up(H_out, 128)

    # Conservative working-set estimate (counts the weight as double-buffered
    # even though Pallas skips the re-DMA for a constant block index).
    params_bytes = 2 * k_pad * n_pad * 2 + 3 * n_pad * 4

    def resident_bytes(tm):
        return (params_bytes
                + 2 * tm * k_pad * 4      # x tile (f32, double-buffered)
                + 2 * tm * n_pad * 2)     # out tile (bf16, double-buffered)

    if resident_bytes(8) <= budget:
        tm_cap = 8
        for cand in (512, 384, 256, 192, 128, 96, 64, 48, 32, 24, 16, 8):
            if resident_bytes(cand) <= budget:
                tm_cap = cand
                break
        return dict(mode="resident", tm=_pick_tm(M, tm_cap),
                    tk=k_pad, k_pad=k_pad, n_pad=n_pad)

    # Fallback: K-tiled reduction.  Bias growth toward tk (fewer accumulator
    # read-modify-writes, matters for the single vst slot on v5e).
    def ktile_bytes(tm, tk):
        return (2 * tm * tk * 4 + 2 * tk * n_pad * 2
                + 2 * tm * n_pad * 2 + tm * n_pad * 4 + 3 * n_pad * 4)

    tm = _pick_tm(M, 256)
    while tm > 8 and ktile_bytes(tm, 128) > budget:
        tm = max(8, _round_up(tm // 2, 8))
    tk = 128
    for cand in (2048, 1024, 512, 256, 128):
        c = min(cand, k_pad)
        if ktile_bytes(tm, c) <= budget:
            tk = c
            break
    return dict(mode="ktile", tm=tm, tk=tk, k_pad=k_pad, n_pad=n_pad)


# --------------------------------------------------------------------------
# Wrapper (== Module(callback).forward(x) == callback(x))
# --------------------------------------------------------------------------

def wrapped_module_forward(x, w, b, gamma, beta, *, eps=1e-5,
                           force_mode=None, force_tm=None, force_tk=None):
    """ReLU(LayerNorm(x @ w + b)) — the representative callback's forward.

    x: [B, T, H_in]; w: [H_in, H_out]; b, gamma, beta: [H_out]
    returns [B, T, H_out] bfloat16.
    """
    B, T, H_in = x.shape
    H_out = w.shape[1]
    M = B * T

    budget = _vmem_budget_bytes()
    cfg = _select_config(M, H_in, H_out, budget)
    if force_mode is not None:
        cfg["mode"] = force_mode
    if force_tm is not None:
        cfg["tm"] = force_tm
    if force_tk is not None:
        cfg["tk"] = force_tk

    mode, tm, tk = cfg["mode"], cfg["tm"], cfg["tk"]
    k_pad, n_pad = cfg["k_pad"], cfg["n_pad"]
    if mode == "ktile":
        k_pad = _round_up(k_pad, tk)
    m_pad = _round_up(M, tm)

    # Activations stay f32 (cast to bf16 inside the kernel, under MXU work).
    x2d = x.reshape(M, H_in).astype(jnp.float32)
    if (m_pad, k_pad) != (M, H_in):
        x2d = jnp.pad(x2d, ((0, m_pad - M), (0, k_pad - H_in)))
    wp = w.astype(jnp.bfloat16)
    if (k_pad, n_pad) != (H_in, H_out):
        wp = jnp.pad(wp, ((0, k_pad - H_in), (0, n_pad - H_out)))
    pad_n = (0, n_pad - H_out)
    bp = jnp.pad(b.astype(jnp.float32), pad_n).reshape(1, n_pad)
    gp = jnp.pad(gamma.astype(jnp.float32), pad_n).reshape(1, n_pad)
    btp = jnp.pad(beta.astype(jnp.float32), pad_n).reshape(1, n_pad)

    out_shape = jax.ShapeDtypeStruct((m_pad, n_pad), jnp.bfloat16)

    if mode == "resident":
        kernel = functools.partial(_fused_resident_kernel,
                                   n_valid=H_out, eps=eps)
        out = pl.pallas_call(
            kernel,
            out_shape=out_shape,
            grid=(m_pad // tm,),
            in_specs=[
                pl.BlockSpec((tm, k_pad), lambda i: (i, 0)),      # x tile
                pl.BlockSpec((k_pad, n_pad), lambda i: (0, 0)),   # w: resident
                pl.BlockSpec((1, n_pad), lambda i: (0, 0)),       # bias
                pl.BlockSpec((1, n_pad), lambda i: (0, 0)),       # gamma
                pl.BlockSpec((1, n_pad), lambda i: (0, 0)),       # beta
            ],
            out_specs=pl.BlockSpec((tm, n_pad), lambda i: (i, 0)),
            compiler_params=pltpu.CompilerParams(
                dimension_semantics=("parallel",),
                vmem_limit_bytes=budget),
        )(x2d, wp, bp, gp, btp)
    else:
        kernel = functools.partial(_fused_ktile_kernel,
                                   n_valid=H_out, eps=eps)
        out = pl.pallas_call(
            kernel,
            out_shape=out_shape,
            grid=(m_pad // tm, k_pad // tk),
            in_specs=[
                pl.BlockSpec((tm, tk), lambda i, k: (i, k)),       # x tile
                pl.BlockSpec((tk, n_pad), lambda i, k: (k, 0)),    # w slab
                pl.BlockSpec((1, n_pad), lambda i, k: (0, 0)),     # bias
                pl.BlockSpec((1, n_pad), lambda i, k: (0, 0)),     # gamma
                pl.BlockSpec((1, n_pad), lambda i, k: (0, 0)),     # beta
            ],
            out_specs=pl.BlockSpec((tm, n_pad), lambda i, k: (i, 0)),
            scratch_shapes=[pltpu.VMEM((tm, n_pad), jnp.float32)],
            compiler_params=pltpu.CompilerParams(
                dimension_semantics=("parallel", "arbitrary"),
                vmem_limit_bytes=budget),
        )(x2d, wp, bp, gp, btp)

    if (m_pad, n_pad) != (M, H_out):
        out = out[:M, :H_out]
    return out.reshape(B, T, H_out)


# --------------------------------------------------------------------------
# Reference + test
# --------------------------------------------------------------------------

def _reference(x, w, b, gamma, beta):
    # Reference uses the same bf16-quantized matmul operands as the kernel.
    xq = x.astype(jnp.bfloat16).astype(jnp.float32)
    wq = w.astype(jnp.bfloat16).astype(jnp.float32)
    h = jnp.einsum("btk,kn->btn", xq, wq) + b
    mean = jnp.mean(h, axis=-1, keepdims=True)
    var = jnp.mean((h - mean) ** 2, axis=-1, keepdims=True)
    normed = (h - mean) * lax.rsqrt(var + 1e-5) * gamma + beta
    return jnp.maximum(normed, 0.0)


if __name__ == "__main__":
    key = jax.random.PRNGKey(0)
    # Small shapes: exercise M tiling, the padded-H_out (n_pad=128 > 96) path,
    # and (in the forced run) the K-reduction path.
    B, T, H_in, H_out = 2, 16, 256, 96
    kx, kw, kb, kg, kbe = jax.random.split(key, 5)

    x = jax.random.normal(kx, (B, T, H_in), dtype=jnp.float32)
    w = jax.random.normal(kw, (H_in, H_out), dtype=jnp.float32) * (H_in ** -0.5)
    b = jax.random.normal(kb, (H_out,), dtype=jnp.float32) * 0.1
    gamma = 1.0 + 0.1 * jax.random.normal(kg, (H_out,), dtype=jnp.float32)
    beta = 0.1 * jax.random.normal(kbe, (H_out,), dtype=jnp.float32)

    y_ref = _reference(x, w, b, gamma, beta)

    # 1) Auto config: weight-resident fast path, >= 2 M tiles.
    y = wrapped_module_forward(x, w, b, gamma, beta)
    jax.block_until_ready(y)
    assert y.shape == (B, T, H_out)
    err = float(jnp.max(jnp.abs(y.astype(jnp.float32) - y_ref)))
    assert jnp.allclose(y.astype(jnp.float32), y_ref, atol=5e-2, rtol=5e-2), err

    # 2) Forced K-tiled fallback (2 K steps): accumulator init/finalize path.
    y2 = wrapped_module_forward(x, w, b, gamma, beta,
                                force_mode="ktile", force_tm=16, force_tk=128)
    jax.block_until_ready(y2)
    err2 = float(jnp.max(jnp.abs(y2.astype(jnp.float32) - y_ref)))
    assert jnp.allclose(y2.astype(jnp.float32), y_ref, atol=5e-2, rtol=5e-2), err2

    # TODO(synk): the wrapper `Module` is a pure pass-through container; only
    # the chosen concrete callback (Linear+LayerNorm+ReLU) has a hot path.
    print("KERNEL_OK")
</pallas_src>

<mosaic_0001>
module attributes {stable_mosaic.version = 11 : i64} {
  func.func @_fused_resident_kernel(%arg0: i32, %arg1: memref<16x256xf32, #tpu.memory_space<vmem>>, %arg2: memref<256x128xbf16, #tpu.memory_space<vmem>>, %arg3: memref<1x128xf32, #tpu.memory_space<vmem>>, %arg4: memref<1x128xf32, #tpu.memory_space<vmem>>, %arg5: memref<1x128xf32, #tpu.memory_space<vmem>>, %arg6: memref<16x128xbf16, #tpu.memory_space<vmem>>) attributes {dimension_semantics = [#tpu.dimension_semantics<parallel>], iteration_bounds = array<i64: 2>, scalar_prefetch = 0 : i64, scratch_operands = 0 : i64, tpu.core_type = #tpu.core_type<tc>, window_params = [{transform_indices = @transform_0, window_bounds = array<i64: 16, 256>}, {pipeline_mode = #tpu.pipeline_mode<synchronous>, transform_indices = @transform_1, window_bounds = array<i64: 256, 128>}, {pipeline_mode = #tpu.pipeline_mode<synchronous>, transform_indices = @transform_2, window_bounds = array<i64: 1, 128>}, {pipeline_mode = #tpu.pipeline_mode<synchronous>, transform_indices = @transform_3, window_bounds = array<i64: 1, 128>}, {pipeline_mode = #tpu.pipeline_mode<synchronous>, transform_indices = @transform_4, window_bounds = array<i64: 1, 128>}, {transform_indices = @transform_5, window_bounds = array<i64: 16, 128>}]} {
    %c0 = arith.constant 0 : index
    %c0_0 = arith.constant 0 : index
    %0 = vector.load %arg1[%c0, %c0_0] : memref<16x256xf32, #tpu.memory_space<vmem>>, vector<16x256xf32>
    %1 = arith.truncf %0 : vector<16x256xf32> to vector<16x256xbf16>
    %c0_1 = arith.constant 0 : index
    %c0_2 = arith.constant 0 : index
    %2 = vector.load %arg2[%c0_1, %c0_2] : memref<256x128xbf16, #tpu.memory_space<vmem>>, vector<256x128xbf16>
    %cst = arith.constant dense<0.000000e+00> : vector<16x128xf32>
    %3 = tpu.matmul %1, %2, %cst {dimension_numbers = #tpu.dot_dimension_numbers<[1], [0], [0], [1], [0, 0, 1, 1], [], []>} : vector<16x256xbf16>, vector<256x128xbf16>, vector<16x128xf32> -> vector<16x128xf32>
    %c0_3 = arith.constant 0 : index
    %c0_4 = arith.constant 0 : index
    %4 = vector.load %arg3[%c0_3, %c0_4] : memref<1x128xf32, #tpu.memory_space<vmem>>, vector<1x128xf32>
    %5 = vector.broadcast %4 : vector<1x128xf32> to vector<16x128xf32>
    %6 = arith.addf %3, %5 : vector<16x128xf32>
    %c0_5 = arith.constant 0 : index
    %c0_6 = arith.constant 0 : index
    %7 = vector.load %arg4[%c0_5, %c0_6] : memref<1x128xf32, #tpu.memory_space<vmem>>, vector<1x128xf32>
    %c0_7 = arith.constant 0 : index
    %c0_8 = arith.constant 0 : index
    %8 = vector.load %arg5[%c0_7, %c0_8] : memref<1x128xf32, #tpu.memory_space<vmem>>, vector<1x128xf32>
    %cst_9 = arith.constant dense<0.000000e+00> : vector<16xf32>
    %9 = vector.multi_reduction <add>, %6, %cst_9 [1] : vector<16x128xf32> to vector<16xf32>
    %10 = vector.shape_cast %9 : vector<16xf32> to vector<16x1xf32>
    %11 = arith.mulf %6, %6 : vector<16x128xf32>
    %cst_10 = arith.constant dense<0.000000e+00> : vector<16xf32>
    %12 = vector.multi_reduction <add>, %11, %cst_10 [1] : vector<16x128xf32> to vector<16xf32>
    %13 = vector.shape_cast %12 : vector<16xf32> to vector<16x1xf32>
    %cst_11 = arith.constant 0.010416667 : f32
    %14 = vector.broadcast %cst_11 : f32 to vector<16x1xf32>
    %15 = arith.mulf %10, %14 : vector<16x1xf32>
    %cst_12 = arith.constant 0.010416667 : f32
    %16 = vector.broadcast %cst_12 : f32 to vector<16x1xf32>
    %17 = arith.mulf %13, %16 : vector<16x1xf32>
    %18 = arith.mulf %15, %15 : vector<16x1xf32>
    %19 = arith.subf %17, %18 : vector<16x1xf32>
    %cst_13 = arith.constant 0.000000e+00 : f32
    %20 = vector.broadcast %cst_13 : f32 to vector<16x1xf32>
    %21 = arith.maximumf %19, %20 : vector<16x1xf32>
    %cst_14 = arith.constant 9.99999974E-6 : f32
    %22 = vector.broadcast %cst_14 : f32 to vector<16x1xf32>
    %23 = arith.addf %21, %22 : vector<16x1xf32>
    %24 = math.rsqrt %23 : vector<16x1xf32>
    %25 = vector.broadcast %15 : vector<16x1xf32> to vector<16x128xf32>
    %26 = arith.subf %6, %25 : vector<16x128xf32>
    %27 = vector.broadcast %24 : vector<16x1xf32> to vector<16x128xf32>
    %28 = vector.broadcast %7 : vector<1x128xf32> to vector<16x128xf32>
    %29 = arith.mulf %27, %28 : vector<16x128xf32>
    %30 = arith.mulf %26, %29 : vector<16x128xf32>
    %31 = vector.broadcast %8 : vector<1x128xf32> to vector<16x128xf32>
    %32 = arith.addf %30, %31 : vector<16x128xf32>
    %cst_15 = arith.constant 0.000000e+00 : f32
    %33 = vector.broadcast %cst_15 : f32 to vector<16x128xf32>
    %34 = arith.maximumf %32, %33 : vector<16x128xf32>
    %35 = arith.truncf %34 : vector<16x128xf32> to vector<16x128xbf16>
    %c0_16 = arith.constant 0 : index
    %c0_17 = arith.constant 0 : index
    %36 = vector.load %arg6[%c0_16, %c0_17] : memref<16x128xbf16, #tpu.memory_space<vmem>>, vector<16x128xbf16>
    tpu.vector_store %arg6[%c0_16, %c0_17], %35 {strides = array<i32>} : memref<16x128xbf16, #tpu.memory_space<vmem>>, vector<16x128xbf16>,
    return
  }
  func.func @transform_0(%arg0: i32) -> (i32, i32) {
    %c0_i32 = arith.constant 0 : i32
    %c0_i32_0 = arith.constant 0 : i32
    return %arg0, %c0_i32 : i32, i32
  }
  func.func @transform_1(%arg0: i32) -> (i32, i32) {
    %c0_i32 = arith.constant 0 : i32
    %c0_i32_0 = arith.constant 0 : i32
    %c0_i32_1 = arith.constant 0 : i32
    return %c0_i32, %c0_i32_0 : i32, i32
  }
  func.func @transform_2(%arg0: i32) -> (i32, i32) {
    %c0_i32 = arith.constant 0 : i32
    %c0_i32_0 = arith.constant 0 : i32
    %c0_i32_1 = arith.constant 0 : i32
    return %c0_i32, %c0_i32_0 : i32, i32
  }
  func.func @transform_3(%arg0: i32) -> (i32, i32) {
    %c0_i32 = arith.constant 0 : i32
    %c0_i32_0 = arith.constant 0 : i32
    %c0_i32_1 = arith.constant 0 : i32
    return %c0_i32, %c0_i32_0 : i32, i32
  }
  func.func @transform_4(%arg0: i32) -> (i32, i32) {
    %c0_i32 = arith.constant 0 : i32
    %c0_i32_0 = arith.constant 0 : i32
    %c0_i32_1 = arith.constant 0 : i32
    return %c0_i32, %c0_i32_0 : i32, i32
  }
  func.func @transform_5(%arg0: i32) -> (i32, i32) {
    %c0_i32 = arith.constant 0 : i32
    %c0_i32_0 = arith.constant 0 : i32
    return %arg0, %c0_i32 : i32, i32
  }
}

</mosaic_0001>

<llo_original>
// kernel: tpu_custom_call.1
$region0: #{tpu_custom_call.1}
  #allocation0 [shape = 'u32[]', space=smem, size = 0x4, offset = 0x4, fixed_abs, tag = 'smem constant byte address 0x4 - core index']
  #allocation1 [shape = 'u32[144,128]{1,0:T(1,128)}', space=vmem, size = 0x12000, scoped, tag = 'internal scratch']
  %s0 = inlined_call_operand.hbm [shape: f32[32,256], index: 0, kind: input, shape index: {}]
  %s1 = inlined_call_operand.hbm [shape: bf16[256,128], index: 1, kind: input, shape index: {}]
  %s2 = inlined_call_operand.vmem [shape: f32[1,128], index: 2, kind: input, shape index: {}]
  %s3 = inlined_call_operand.vmem [shape: f32[1,128], index: 3, kind: input, shape index: {}]
  %s4 = inlined_call_operand.vmem [shape: f32[1,128], index: 4, kind: input, shape index: {}]
  %s5 = inlined_call_operand.hbm [shape: bf16[32,128], index: 5, kind: output, shape index: {}]
  %s6 = sld [smem:[#allocation0]]
  $region61: #{tpu_custom_call.1} parent=0
    _
  %s8 = ssub.s32 1, %s6
  %s9 = scalar_select 0, %s8, %s6
  $region1: #{tpu_custom_call.1} parent=0
    #allocation2 [shape = 'u8[32768]{0}', space=vmem, size = 0x8000, scoped, tag = 'input window, operand 0']
    #allocation3 [shape = 's32[2]{0}', space=sflag, size = 0x8, scoped, tag = 'scoped memory for tpu_custom_call.1']
    #allocation4 [shape = 's32[2]{0}', space=sflag, size = 0x8, scoped, tag = 'scoped memory for tpu_custom_call.1']
    #allocation5 [shape = 'u8[65536]{0}', space=vmem, size = 0x10000, scoped, tag = 'input window, operand 1, single buffered']
    #allocation6 [shape = 's32[1]{0}', space=sflag, size = 0x4, scoped, tag = 'scoped memory for tpu_custom_call.1']
    #allocation7 [shape = 'u8[8192]{0}', space=vmem, size = 0x2000, scoped, tag = 'output window, operand 0']
    %10 = vsyncpa [#allocation3], 0
    %s11 = scalar_lea.sflag [#allocation3], 1
    %12 = vsyncpa %s11, 0
    %13 = vsyncpa [#allocation6], 0
    %14 = vsyncpa [#allocation4], 0
    %s15 = scalar_lea.sflag [#allocation4], 1
    %16 = vsyncpa %s15, 0
    loop: start=0, step=1, limit=4
    $region2: #{tpu_custom_call.1} parent=1 // loop_pre_header
      _
    $region3: #{tpu_custom_call.1} parent=1 // loop_header
      %s18 = sphi 0, %s22
      %p19 = scmp.ge.s32.totalorder %s18, 4
      %s28 = sphi 0, %s30
      %s31 = sphi 0, %s28
      %s32 = sphi 0, %s31
      %s48 = sphi 0, %s32
      %s52 = sphi 0, %s52
      %s54 = sphi 0, %s52
      %s55 = sphi 0, %s54
      %s69 = sphi 0, %s55
      %s73 = sphi 0, %s73
      %s75 = sphi 0, %s73
      %s76 = sphi 0, %s75
      %s90 = sphi 0, %s76
      %s94 = sphi 0, %s94
      %s96 = sphi 0, %s94
      %s97 = sphi 0, %s96
      %s111 = sphi 0, %s97
      %s115 = sphi 0, %s115
      %s117 = sphi 0, %s115
      %s118 = sphi 0, %s117
      %s132 = sphi 0, %s118
      %s138 = sphi 0, %s140
      %s141 = sphi 0, %s138
      %s142 = sphi 0, %s141
      %s158 = sphi 0, %s142
    $region4: #{tpu_custom_call.1} parent=1 // loop_header_branch
      %21 = sbr.rel (%p19) target = $region8
    $region5: #{tpu_custom_call.1} parent=1 // loop_body
      %s23 = ssub.s32 %s18, 1
      %s24 = ssub.s32 %s18, 2
      %s25 = sadd.s32 %s18, 1
      %s26 = ssub.s32 %s18, %s25
      %p27 = scmp.eq.s32.totalorder %s26, 0
      %s29 = sadd.s32 %s28, 1
      %s30 = scalar_select %p27, %s28, %s29
      %p33 = pneg %p27
      %p34 = scmp.eq.s32.totalorder %s18, 1
      %p35 = por %p33, %p34
      %p36 = scmp.ne.s32.totalorder %s28, %s31
      %p37 = scmp.eq.s32.totalorder %s18, 0
      %p38 = por %p36, %p37
      %p39 = scmp.ne.s32.totalorder %s28, %s31
      %p40 = scmp.eq.s32.totalorder %s23, 1
      %p41 = por %p39, %p40
      %p42 = scmp.ne.s32.totalorder %s31, %s32
      %p43 = scmp.eq.s32.totalorder %s23, 0
      %p44 = por %p42, %p43
      %p45 = scmp.ne.s32.totalorder %s31, %s32
      %p46 = scmp.eq.s32.totalorder %s24, 1
      %p47 = por %p45, %p46
      %p49 = scmp.ne.s32.totalorder %s32, %s48
      %p50 = scmp.eq.s32.totalorder %s24, 0
      %p51 = por %p49, %p50
      %s53 = sadd.s32 %s52, 1
      %p56 = scmp.eq.s32.totalorder %s18, 1
      %p57 = scmp.ne.s32.totalorder %s52, %s54
      %p58 = scmp.eq.s32.totalorder %s18, 0
      %p59 = por %p57, %p58
      %p60 = scmp.ne.s32.totalorder %s52, %s54
      %p61 = scmp.eq.s32.totalorder %s23, 1
      %p62 = por %p60, %p61
      %p63 = scmp.ne.s32.totalorder %s54, %s55
      %p64 = scmp.eq.s32.totalorder %s23, 0
      %p65 = por %p63, %p64
      %p66 = scmp.ne.s32.totalorder %s54, %s55
      %p67 = scmp.eq.s32.totalorder %s24, 1
      %p68 = por %p66, %p67
      %p70 = scmp.ne.s32.totalorder %s55, %s69
      %p71 = scmp.eq.s32.totalorder %s24, 0
      %p72 = por %p70, %p71
      %s74 = sadd.s32 %s73, 1
      %p77 = scmp.eq.s32.totalorder %s18, 1
      %p78 = scmp.ne.s32.totalorder %s73, %s75
      %p79 = scmp.eq.s32.totalorder %s18, 0
      %p80 = por %p78, %p79
      %p81 = scmp.ne.s32.totalorder %s73, %s75
      %p82 = scmp.eq.s32.totalorder %s23, 1
      %p83 = por %p81, %p82
      %p84 = scmp.ne.s32.totalorder %s75, %s76
      %p85 = scmp.eq.s32.totalorder %s23, 0
      %p86 = por %p84, %p85
      %p87 = scmp.ne.s32.totalorder %s75, %s76
      %p88 = scmp.eq.s32.totalorder %s24, 1
      %p89 = por %p87, %p88
      %p91 = scmp.ne.s32.totalorder %s76, %s90
      %p92 = scmp.eq.s32.totalorder %s24, 0
      %p93 = por %p91, %p92
      %s95 = sadd.s32 %s94, 1
      %p98 = scmp.eq.s32.totalorder %s18, 1
      %p99 = scmp.ne.s32.totalorder %s94, %s96
      %p100 = scmp.eq.s32.totalorder %s18, 0
      %p101 = por %p99, %p100
      %p102 = scmp.ne.s32.totalorder %s94, %s96
      %p103 = scmp.eq.s32.totalorder %s23, 1
      %p104 = por %p102, %p103
      %p105 = scmp.ne.s32.totalorder %s96, %s97
      %p106 = scmp.eq.s32.totalorder %s23, 0
      %p107 = por %p105, %p106
      %p108 = scmp.ne.s32.totalorder %s96, %s97
      %p109 = scmp.eq.s32.totalorder %s24, 1
      %p110 = por %p108, %p109
      %p112 = scmp.ne.s32.totalorder %s97, %s111
      %p113 = scmp.eq.s32.totalorder %s24, 0
      %p114 = por %p112, %p113
      %s116 = sadd.s32 %s115, 1
      %p119 = scmp.eq.s32.totalorder %s18, 1
      %p120 = scmp.ne.s32.totalorder %s115, %s117
      %p121 = scmp.eq.s32.totalorder %s18, 0
      %p122 = por %p120, %p121
      %p123 = scmp.ne.s32.totalorder %s115, %s117
      %p124 = scmp.eq.s32.totalorder %s23, 1
      %p125 = por %p123, %p124
      %p126 = scmp.ne.s32.totalorder %s117, %s118
      %p127 = scmp.eq.s32.totalorder %s23, 0
      %p128 = por %p126, %p127
      %p129 = scmp.ne.s32.totalorder %s117, %s118
      %p130 = scmp.eq.s32.totalorder %s24, 1
      %p131 = por %p129, %p130
      %p133 = scmp.ne.s32.totalorder %s118, %s132
      %p134 = scmp.eq.s32.totalorder %s24, 0
      %p135 = por %p133, %p134
      %s136 = ssub.s32 %s18, %s25
      %p137 = scmp.eq.s32.totalorder %s136, 0
      %s139 = sadd.s32 %s138, 1
      %s140 = scalar_select %p137, %s138, %s139
      %p143 = pneg %p137
      %p144 = scmp.eq.s32.totalorder %s18, 1
      %p145 = por %p143, %p144
      %p146 = scmp.ne.s32.totalorder %s138, %s141
      %p147 = scmp.eq.s32.totalorder %s18, 0
      %p148 = por %p146, %p147
      %p149 = scmp.ne.s32.totalorder %s138, %s141
      %p150 = scmp.eq.s32.totalorder %s23, 1
      %p151 = por %p149, %p150
      %p152 = scmp.ne.s32.totalorder %s141, %s142
      %p153 = scmp.eq.s32.totalorder %s23, 0
      %p154 = por %p152, %p153
      %p155 = scmp.ne.s32.totalorder %s141, %s142
      %p156 = scmp.eq.s32.totalorder %s24, 1
      %p157 = por %p155, %p156
      %p159 = scmp.ne.s32.totalorder %s142, %s158
      %p160 = scmp.eq.s32.totalorder %s24, 0
      %p161 = por %p159, %p160
      %p162 = scmp.le.s32.totalorder 1, %s18
      %p163 = scmp.lt.s32.totalorder %s18, 3
      %p164 = pnand %p162, %p163
      %p165 = pneg %p164
      // Predicated region
      $region9: #{tpu_custom_call.1} parent=5 // pred_check
        _
      $region10: #{tpu_custom_call.1} parent=5 // pred_check_branch
        %167 = sbr.rel (%p164) target = $region12
      $region11: #{tpu_custom_call.1} parent=5 // pred_region
        %s168 = ssub.s32 %s18, 1
        // Predicated region
        $region13: #{tpu_custom_call.1} parent=11 // pred_check
          %p169 = pneg %p65
        $region14: #{tpu_custom_call.1} parent=11 // pred_check_branch
          %171 = sbr.rel (%p169) target = $region16
        $region15: #{tpu_custom_call.1} parent=11 // pred_region
          %s173 = ssub.s32 2048, 2048
          %174 = vsyncadd [#allocation6], %s173
          %s175 = sshll.u32 [#allocation5], 4
          %s176 = int_to_ptr.vmem [resolvable:$true] %s175
          %181 = dma.hbm_to_vmem [thread:$0]  %s1, 2048, %s176, [#allocation6], 64, 64, 4
        $region16: #{tpu_custom_call.1} parent=11 // pred_fallthru
          _
        // Predicated region
        $region17: #{tpu_custom_call.1} parent=11 // pred_check
          %p182 = pneg %p86
        $region18: #{tpu_custom_call.1} parent=11 // pred_check_branch
          %184 = sbr.rel (%p182) target = $region20
        $region19: #{tpu_custom_call.1} parent=11 // pred_region
          _
        $region20: #{tpu_custom_call.1} parent=11 // pred_fallthru
          _
        // Predicated region
        $region21: #{tpu_custom_call.1} parent=11 // pred_check
          %p185 = pneg %p107
        $region22: #{tpu_custom_call.1} parent=11 // pred_check_branch
          %187 = sbr.rel (%p185) target = $region24
        $region23: #{tpu_custom_call.1} parent=11 // pred_region
          _
        $region24: #{tpu_custom_call.1} parent=11 // pred_fallthru
          _
        // Predicated region
        $region25: #{tpu_custom_call.1} parent=11 // pred_check
          %p188 = pneg %p128
        $region26: #{tpu_custom_call.1} parent=11 // pred_check_branch
          %190 = sbr.rel (%p188) target = $region28
        $region27: #{tpu_custom_call.1} parent=11 // pred_region
          _
        $region28: #{tpu_custom_call.1} parent=11 // pred_fallthru
          _
      $region12: #{tpu_custom_call.1} parent=5 // pred_fallthru
        _
      %p191 = scmp.lt.s32.totalorder %s18, 2
      // Predicated region
      $region29: #{tpu_custom_call.1} parent=5 // pred_check
        %p192 = pneg %p191
      $region30: #{tpu_custom_call.1} parent=5 // pred_check_branch
        %194 = sbr.rel (%p192) target = $region32
      $region31: #{tpu_custom_call.1} parent=5 // pred_region
        // Predicated region
        $region33: #{tpu_custom_call.1} parent=31 // pred_check
          %p195 = pneg %p38
        $region34: #{tpu_custom_call.1} parent=31 // pred_check_branch
          %197 = sbr.rel (%p195) target = $region36
        $region35: #{tpu_custom_call.1} parent=31 // pred_region
          %s198 = sand.u32 %s28, 1
          %s199 = scalar_lea.sflag [#allocation3], %s198
          %s200 = sand.u32 %s28, 1
          %s201 = smul.addr %s200, 32
          %s202 = scalar_lea.vmem [#allocation2], %s201
          %s203 = smul.u32 2, %s18
          %s205 = ssub.s32 512, 512
          %206 = vsyncadd %s199, %s205
          %s207 = smul.addr %s203, 2
          %s208 = smul.addr %s207, 128
          %s209 = scalar_lea.hbm %s0, %s208
          %s210 = sshll.u32 %s202, 4
          %s211 = int_to_ptr.vmem [resolvable:$true] %s210
          %216 = dma.hbm_to_vmem [thread:$0]  %s209, 512, %s211, %s199, 256, 256, 16
        $region36: #{tpu_custom_call.1} parent=31 // pred_fallthru
          _
      $region32: #{tpu_custom_call.1} parent=5 // pred_fallthru
        _
      %p217 = scmp.le.s32.totalorder 1, %s18
      %p218 = scmp.lt.s32.totalorder %s18, 3
      %p219 = pnand %p217, %p218
      %p220 = pneg %p219
      // Predicated region
      $region37: #{tpu_custom_call.1} parent=5 // pred_check
        _
      $region38: #{tpu_custom_call.1} parent=5 // pred_check_branch
        %222 = sbr.rel (%p219) target = $region40
      $region39: #{tpu_custom_call.1} parent=5 // pred_region
        %s223 = ssub.s32 %s18, 1
        %s224 = sand.u32 %s31, 1
        %s225 = scalar_lea.sflag [#allocation3], %s224
        %s226 = sand.u32 %s31, 1
        %s227 = smul.addr %s226, 32
        %s228 = scalar_lea.vmem [#allocation2], %s227
        // Predicated region
        $region41: #{tpu_custom_call.1} parent=39 // pred_check
          %p229 = pneg %p44
        $region42: #{tpu_custom_call.1} parent=39 // pred_check_branch
          %231 = sbr.rel (%p229) target = $region44
        $region43: #{tpu_custom_call.1} parent=39 // pred_region
          %232 = dma.done %s225, 512
        $region44: #{tpu_custom_call.1} parent=39 // pred_fallthru
          _
        // Predicated region
        $region45: #{tpu_custom_call.1} parent=39 // pred_check
          %p233 = pneg %p65
        $region46: #{tpu_custom_call.1} parent=39 // pred_check_branch
          %235 = sbr.rel (%p233) target = $region48
        $region47: #{tpu_custom_call.1} parent=39 // pred_region
          %236 = dma.done [#allocation6], 2048
        $region48: #{tpu_custom_call.1} parent=39 // pred_fallthru
          _
        %s237 = sand.u32 %s31, 1
        %s238 = scalar_lea.sflag [#allocation3], %s237
        %s239 = sand.u32 %s31, 1
        %s240 = smul.addr %s239, 32
        %s241 = scalar_lea.vmem [#allocation2], %s240
        %p242 = pneg %p44
        %p243 = pneg %p41
        %p244 = pneg %p65
        %p245 = pneg %p62
        %p246 = pneg %p86
        %p247 = pneg %p83
        %p248 = pneg %p107
        %p249 = pneg %p104
        %p250 = pneg %p128
        %p251 = pneg %p125
        %p252 = pneg %p154
        %p253 = pneg %p151
        %s254 = sand.u32 %s141, 1
        %s255 = scalar_lea.sflag [#allocation4], %s254
        %s256 = sand.u32 %s141, 1
        %s257 = smul.addr %s256, 8
        %s258 = scalar_lea.vmem [#allocation7], %s257
        %s259 = smul.u32 2, %s23
        %s260 = smul.u32 2, %s23
        %v262 = vld [vmem:[%s228] sm:$0xff]
        %v263 = vld [vmem:[%s228 + $0x8] sm:$0xff]
        %v264 = vld [vmem:[%s228 + $0x10] sm:$0xff]
        %v265 = vld [vmem:[%s228 + $0x18] sm:$0xff]
        %v266 = vpack.c.bf16 %v264, %v262
        %v267 = vpack.c.bf16 %v265, %v263
        %v268 = vld [vmem:[#allocation5] sm:$0xf]
        %v269 = vld [vmem:[#allocation5 + $0x4] sm:$0xf]
        %v270 = vld [vmem:[#allocation5 + $0x8] sm:$0xf]
        %v271 = vld [vmem:[#allocation5 + $0xc] sm:$0xf]
        %v272 = vld [vmem:[#allocation5 + $0x10] sm:$0xf]
        %v273 = vld [vmem:[#allocation5 + $0x14] sm:$0xf]
        %v274 = vld [vmem:[#allocation5 + $0x18] sm:$0xf]
        %v275 = vld [vmem:[#allocation5 + $0x1c] sm:$0xf]
        %v276 = vld [vmem:[#allocation5 + $0x20] sm:$0xf]
        %v277 = vld [vmem:[#allocation5 + $0x24] sm:$0xf]
        %v278 = vld [vmem:[#allocation5 + $0x28] sm:$0xf]
        %v279 = vld [vmem:[#allocation5 + $0x2c] sm:$0xf]
        %v280 = vld [vmem:[#allocation5 + $0x30] sm:$0xf]
        %v281 = vld [vmem:[#allocation5 + $0x34] sm:$0xf]
        %v282 = vld [vmem:[#allocation5 + $0x38] sm:$0xf]
        %v283 = vld [vmem:[#allocation5 + $0x3c] sm:$0xf]
        %v284 = vld [vmem:[#allocation5 + $0x40] sm:$0xf]
        %v285 = vld [vmem:[#allocation5 + $0x44] sm:$0xf]
        %v286 = vld [vmem:[#allocation5 + $0x48] sm:$0xf]
        %v287 = vld [vmem:[#allocation5 + $0x4c] sm:$0xf]
        %v288 = vld [vmem:[#allocation5 + $0x50] sm:$0xf]
        %v289 = vld [vmem:[#allocation5 + $0x54] sm:$0xf]
        %v290 = vld [vmem:[#allocation5 + $0x58] sm:$0xf]
        %v291 = vld [vmem:[#allocation5 + $0x5c] sm:$0xf]
        %v292 = vld [vmem:[#allocation5 + $0x60] sm:$0xf]
        %v293 = vld [vmem:[#allocation5 + $0x64] sm:$0xf]
        %v294 = vld [vmem:[#allocation5 + $0x68] sm:$0xf]
        %v295 = vld [vmem:[#allocation5 + $0x6c] sm:$0xf]
        %v296 = vld [vmem:[#allocation5 + $0x70] sm:$0xf]
        %v297 = vld [vmem:[#allocation5 + $0x74] sm:$0xf]
        %v298 = vld [vmem:[#allocation5 + $0x78] sm:$0xf]
        %v299 = vld [vmem:[#allocation5 + $0x7c] sm:$0xf]
        %v300 = vld [vmem:[%s2] sm:$0x1]
        %v302 = vlaneseq
        %v303 = vshrl.u32 %v302, 7
        %v304 = vsub.s32 0, %v303
        %v305 = vrot.slane %v300, %v304
        %v339 = vunpack.c.l.b16 %v268
        %v340 = vunpack.c.l.b16 %v269
        %v341 = vunpack.c.l.b16 %v270
        %v342 = vunpack.c.l.b16 %v271
        %v343 = vunpack.c.l.b16 %v272
        %v344 = vunpack.c.l.b16 %v273
        %v345 = vunpack.c.l.b16 %v274
        %v346 = vunpack.c.l.b16 %v275
        %v347 = vunpack.c.l.b16 %v276
        %v348 = vunpack.c.l.b16 %v277
        %v349 = vunpack.c.l.b16 %v278
        %v350 = vunpack.c.l.b16 %v279
        %v351 = vunpack.c.l.b16 %v280
        %v352 = vunpack.c.l.b16 %v281
        %v353 = vunpack.c.l.b16 %v282
        %v354 = vunpack.c.l.b16 %v283
        %v355 = vunpack.c.l.b16 %v284
        %v356 = vunpack.c.l.b16 %v285
        %v357 = vunpack.c.l.b16 %v286
        %v358 = vunpack.c.l.b16 %v287
        %v359 = vunpack.c.l.b16 %v288
        %v360 = vunpack.c.l.b16 %v289
        %v361 = vunpack.c.l.b16 %v290
        %v362 = vunpack.c.l.b16 %v291
        %v363 = vunpack.c.l.b16 %v292
        %v364 = vunpack.c.l.b16 %v293
        %v365 = vunpack.c.l.b16 %v294
        %v366 = vunpack.c.l.b16 %v295
        %v367 = vunpack.c.l.b16 %v296
        %v368 = vunpack.c.l.b16 %v297
        %v369 = vunpack.c.l.b16 %v298
        %v370 = vunpack.c.l.b16 %v299
        %v371 = vpack.c.b16 %v340, %v339
        %v372 = vpack.c.b16 %v342, %v341
        %v373 = vpack.c.b16 %v344, %v343
        %v374 = vpack.c.b16 %v346, %v345
        %v375 = vpack.c.b16 %v348, %v347
        %v376 = vpack.c.b16 %v350, %v349
        %v377 = vpack.c.b16 %v352, %v351
        %v378 = vpack.c.b16 %v354, %v353
        %v379 = vpack.c.b16 %v356, %v355
        %v380 = vpack.c.b16 %v358, %v357
        %v381 = vpack.c.b16 %v360, %v359
        %v382 = vpack.c.b16 %v362, %v361
        %v383 = vpack.c.b16 %v364, %v363
        %v384 = vpack.c.b16 %v366, %v365
        %v385 = vpack.c.b16 %v368, %v367
        %v386 = vpack.c.b16 %v370, %v369
        %403 = vmatprep.subr.bf16.mxu0 0
        %404 = vmatpush1.bf16.msra.mxu0 %v378
        %405 = vmatprep.subr.bf16.mxu0 0
        %406 = vmatpush1.bf16.msra.mxu0 %v377
        %407 = vmatprep.subr.bf16.mxu0 0
        %408 = vmatpush1.bf16.msra.mxu0 %v376
        %409 = vmatprep.subr.bf16.mxu0 0
        %410 = vmatpush1.bf16.msra.mxu0 %v375
        %411 = vmatprep.subr.bf16.mxu0 0
        %412 = vmatpush1.bf16.msra.mxu0 %v374
        %413 = vmatprep.subr.bf16.mxu0 0
        %414 = vmatpush1.bf16.msra.mxu0 %v373
        %415 = vmatprep.subr.bf16.mxu0 0
        %416 = vmatpush1.bf16.msra.mxu0 %v372
        %417 = vmatprep.subr.bf16.mxu0 0
        %418 = vmatpush1.bf16.msra.mxu0 %v371
        %419 = vmatprep.subr.bf16.mxu0 0
        %420 = vmatpush2.bf16.msra.mxu0 %v386
        %421 = vmatprep.subr.bf16.mxu0 0
        %422 = vmatpush2.bf16.msra.mxu0 %v385
        %423 = vmatprep.subr.bf16.mxu0 0
        %424 = vmatpush2.bf16.msra.mxu0 %v384
        %425 = vmatprep.subr.bf16.mxu0 0
        %426 = vmatpush2.bf16.msra.mxu0 %v383
        %427 = vmatprep.subr.bf16.mxu0 0
        %428 = vmatpush2.bf16.msra.mxu0 %v382
        %429 = vmatprep.subr.bf16.mxu0 0
        %430 = vmatpush2.bf16.msra.mxu0 %v381
        %431 = vmatprep.subr.bf16.mxu0 0
        %432 = vmatpush2.bf16.msra.mxu0 %v380
        %433 = vmatprep.subr.bf16.mxu0 0
        %434 = vmatpush2.bf16.msra.mxu0 %v379
        %435 = vmatprep.mubr.bf16.mxu0 %v267
        %436 = vmatmul.mubr.bf16.gmra.mxu0 %v266
        %v437 = vpop.f32.mrf.mxu0
        %v438 = vadd.f32 %v305, %v437
        %v439 = vpop.f32.mrf.mxu0
        %v440 = vpop.f32.mrf.mxu0
        %v441 = vadd.f32 %v305, %v440
        %v442 = vpop.f32.mrf.mxu0
        %443 = vdwg.mxu0
        %v444 = vld [vmem:[%s3] sm:$0x1]
        %v445 = vld [vmem:[%s4] sm:$0x1]
        %446 = vadd.xlane.f32.xlu0 %v438
        %v447 = vpop.xlane.xlu0 %446
        %448 = vadd.xlane.f32.xlu0 %v441
        %v449 = vpop.xlane.xlu0 %448
        %v450 = vmul.f32 %v438, %v438
        %v451 = vmul.f32 %v441, %v441
        %452 = vadd.xlane.f32.xlu0 %v450
        %v453 = vpop.xlane.xlu0 %452
        %454 = vadd.xlane.f32.xlu0 %v451
        %v455 = vpop.xlane.xlu0 %454
        %v456 = vmul.f32 %v447, 0.010416667
        %v457 = vmul.f32 %v449, 0.010416667
        %v458 = vmul.f32 %v453, 0.010416667
        %v459 = vmul.f32 %v455, 0.010416667
        %v460 = vmul.f32 %v456, %v456
        %v461 = vmul.f32 %v457, %v457
        %v462 = vsub.f32 %v458, %v460
        %v463 = vsub.f32 %v459, %v461
        %v464 = vmax.f32 %v462, 0.0
        %v465 = vmax.f32 %v463, 0.0
        %v466 = vadd.f32 %v464, 1e-05
        %v467 = vadd.f32 %v465, 1e-05
        %v468 = vrsqrt.pop %v466
        %v469 = vrsqrt.pop %v467
        %v470 = vsub.f32 %v438, %v456
        %v471 = vsub.f32 %v441, %v457
        %v473 = vlaneseq
        %v474 = vshrl.u32 %v473, 7
        %v475 = vsub.s32 0, %v474
        %v476 = vrot.slane %v444, %v475
        %v478 = vmul.f32 %v468, %v476
        %v479 = vmul.f32 %v469, %v476
        %v480 = vmul.f32 %v470, %v478
        %v481 = vmul.f32 %v471, %v479
        %v483 = vlaneseq
        %v484 = vshrl.u32 %v483, 7
        %v485 = vsub.s32 0, %v484
        %v486 = vrot.slane %v445, %v485
        %v488 = vadd.f32 %v480, %v486
        %v489 = vadd.f32 %v481, %v486
        %v490 = vmax.f32 %v488, 0.0
        %v491 = vmax.f32 %v489, 0.0
        %v492 = vpack.c.bf16 %v491, %v490
        %v494 = vunpack.c.l.b16 %v492
        %v495 = vunpack.c.h.b16 %v492
        %v496 = vpack.c.b16 %v494, %v494
        %v497 = vpack.c.b16 %v495, %v495
        %500 = vst [vmem:[%s258] sm:$0xf] %v496
        %501 = vst [vmem:[%s258 + $0x4] sm:$0xf] %v497
        %s502 = sand.u32 %s141, 1
        %s503 = scalar_lea.sflag [#allocation4], %s502
        %s504 = sand.u32 %s141, 1
        %s505 = smul.addr %s504, 8
        %s506 = scalar_lea.vmem [#allocation7], %s505
        // Predicated region
        $region49: #{tpu_custom_call.1} parent=39 // pred_check
          %p507 = pneg %p151
        $region50: #{tpu_custom_call.1} parent=39 // pred_check_branch
          %509 = sbr.rel (%p507) target = $region52
        $region51: #{tpu_custom_call.1} parent=39 // pred_region
          %s510 = smul.u32 2, %s23
          %s512 = ssub.s32 128, 128
          %513 = vsyncadd %s503, %s512
          %s514 = smul.addr %s510, 64
          %s515 = scalar_lea.hbm %s5, %s514
          %s516 = sshll.u32 %s506, 4
          %s517 = int_to_ptr.vmem [resolvable:$true] %s516
          %522 = dma.vmem_to_hbm [thread:$0]  %s517, 128, %s515, %s503, 64, 64, 4
        $region52: #{tpu_custom_call.1} parent=39 // pred_fallthru
          _
      $region40: #{tpu_custom_call.1} parent=5 // pred_fallthru
        _
      %p523 = scmp.le.s32.totalorder 2, %s18
      // Predicated region
      $region53: #{tpu_custom_call.1} parent=5 // pred_check
        %p524 = pneg %p523
      $region54: #{tpu_custom_call.1} parent=5 // pred_check_branch
        %526 = sbr.rel (%p524) target = $region56
      $region55: #{tpu_custom_call.1} parent=5 // pred_region
        %s527 = ssub.s32 %s18, 2
        // Predicated region
        $region57: #{tpu_custom_call.1} parent=55 // pred_check
          %p528 = pneg %p157
        $region58: #{tpu_custom_call.1} parent=55 // pred_check_branch
          %530 = sbr.rel (%p528) target = $region60
        $region59: #{tpu_custom_call.1} parent=55 // pred_region
          %s531 = sand.u32 %s142, 1
          %s532 = scalar_lea.sflag [#allocation4], %s531
          %s533 = sand.u32 %s142, 1
          %s534 = smul.addr %s533, 8
          %s535 = scalar_lea.vmem [#allocation7], %s534
          %536 = dma.done %s532, 128
        $region60: #{tpu_custom_call.1} parent=55 // pred_fallthru
          _
      $region56: #{tpu_custom_call.1} parent=5 // pred_fallthru
        _
    $region6: #{tpu_custom_call.1} parent=1 // loop_footer
      %s22 = sadd.s32 1, %s18
    $region7: #{tpu_custom_call.1} parent=1 // loop_footer_branch
      %17 = sbr.rel target = $region3
    $region8: #{tpu_custom_call.1} parent=1 // loop_exit
      _
    %537 = vsyncpa [#allocation3], 1
    %s538 = scalar_lea.sflag [#allocation3], 1
    %539 = vsyncpa %s538, 1
    %540 = vsyncpa [#allocation6], 1
    %541 = vsyncpa [#allocation4], 1
    %s542 = scalar_lea.sflag [#allocation4], 1
    %543 = vsyncpa %s542, 1

</llo_original>
